<compile_context>
chip_gen: v5e
topology: v5e:2x2
jax: 0.10.0
libtpu: 0.0.40
codegen_flags: <defaults>
</compile_context>

<pallas_src>
import functools

import jax
import jax.numpy as jnp
from jax.experimental import pallas as pl
from jax.experimental.pallas import tpu as pltpu


def _decomp_kernel(w_ref, x_ref, res_ref, mean_ref, *, inv_k, out_len):
    # w_ref:    (L_out, L)        f32 integer band counts (edge replication folded in)
    # x_ref:    (Bt, L, Ct)       original series block
    # res_ref:  (Bt, L_out, Ct)   x - moving_mean
    # mean_ref: (Bt, L_out, Ct)   moving_mean
    w = w_ref[...]
    bt = x_ref.shape[0]
    for b in range(bt):  # static, kept small (<= 8) by the tile chooser
        xb = x_ref[b].astype(jnp.float32)                       # (L, Ct)
        mean = jnp.dot(w, xb, preferred_element_type=jnp.float32) * inv_k
        mean_ref[b] = mean.astype(mean_ref.dtype)
        res_ref[b] = (xb[:out_len, :] - mean).astype(res_ref.dtype)


def _band_counts(L, out_len, kernel_size, pad):
    """(out_len, L) f32 matrix: how many of the K taps of output step `o`
    land on raw timestep `l` (replication of timestep 0 / L-1 folded in).
    Entries are exact small integers; the 1/K scale is applied in-kernel."""
    o = jnp.arange(out_len, dtype=jnp.int32)[:, None]
    l = jnp.arange(L, dtype=jnp.int32)[None, :]
    lo = o - pad                        # first (unclamped) raw tap of window o
    hi = o - pad + kernel_size - 1      # last (unclamped) raw tap of window o
    counts = jnp.logical_and(l >= jnp.maximum(lo, 0),
                             l <= jnp.minimum(hi, L - 1)).astype(jnp.float32)
    counts = counts.at[:, 0].add(jnp.maximum(-lo[:, 0], 0).astype(jnp.float32))
    counts = counts.at[:, L - 1].add(
        jnp.maximum(hi[:, 0] - (L - 1), 0).astype(jnp.float32))
    return counts


def _vmem_budget():
    """Generation-aware (budget_per_block, scoped_vmem_limit) in bytes."""
    try:
        cap = int(pltpu.get_tpu_info().vmem_capacity_bytes)
    except Exception:
        cap = 64 * 1024 * 1024  # conservative fallback (v7x-sized)
    budget = min(32 * 1024 * 1024, cap // 4)   # ~32 MiB on v5e/v6e, ~16 MiB on v7x
    limit = min(64 * 1024 * 1024, cap // 2)
    return budget, limit


def _choose_tiles(B, L, out_len, C, itemsize, budget):
    """Pick (Bt, Ct) block sizes against the per-block VMEM budget."""

    def block_bytes(bt, ct):
        io = 2 * bt * ct * (L + 2 * out_len) * itemsize   # dbl-buffered in + 2 outs
        tmp = ct * (L + 2 * out_len) * 4                  # f32 temporaries (one batch row)
        wb = 2 * out_len * L * 4                          # resident band matrix
        return io + tmp + wb

    # Channel tile: lane-dense multiple of 128 dividing C when possible.
    if C % 128 == 0:
        Ct = 128
        while Ct * 2 <= C and C % (Ct * 2) == 0 and block_bytes(1, Ct * 2) <= budget:
            Ct *= 2
    else:
        Ct = C  # TODO(synk): time-on-lanes layout for C % 128 != 0.

    # Batch tile: only force Bt <= B//2 (megacore) if the channel grid alone
    # would leave a single block; tiny problems collapse to as few blocks as possible.
    if C // Ct >= 2 or block_bytes(B, Ct) <= 2 * 1024 * 1024:
        max_bt = B
    else:
        max_bt = max(1, B // 2)
    max_bt = min(max_bt, 8)  # keep the in-kernel per-batch matmul loop short
    Bt = 1
    for cand in range(max_bt, 0, -1):
        if B % cand == 0 and block_bytes(cand, Ct) <= budget:
            Bt = cand
            break
    return Bt, Ct


def series_decomp(x, kernel_size):
    """Pallas implementation of series_decomp(kernel_size).forward(x).

    x: (B, L, C) -> (res, moving_mean).  For odd kernel_size (the only case
    the PyTorch module supports) both outputs are (B, L, C)."""
    B, L, C = x.shape
    pad = (kernel_size - 1) // 2
    out_len = L + 2 * pad - kernel_size + 1  # == L for odd kernel_size

    budget, vmem_limit = _vmem_budget()
    Bt, Ct = _choose_tiles(B, L, out_len, C, jnp.dtype(x.dtype).itemsize, budget)
    grid = (B // Bt, C // Ct)

    w = _band_counts(L, out_len, kernel_size, pad)

    kernel = functools.partial(
        _decomp_kernel, inv_k=1.0 / kernel_size, out_len=out_len)

    res, mean = pl.pallas_call(
        kernel,
        out_shape=(
            jax.ShapeDtypeStruct((B, out_len, C), x.dtype),
            jax.ShapeDtypeStruct((B, out_len, C), x.dtype),
        ),
        grid_spec=pltpu.PrefetchScalarGridSpec(
            num_scalar_prefetch=0,
            grid=grid,
            in_specs=[
                pl.BlockSpec((out_len, L), lambda b, c: (0, 0)),    # band matrix
                pl.BlockSpec((Bt, L, Ct), lambda b, c: (b, 0, c)),  # x
            ],
            out_specs=[
                pl.BlockSpec((Bt, out_len, Ct), lambda b, c: (b, 0, c)),
                pl.BlockSpec((Bt, out_len, Ct), lambda b, c: (b, 0, c)),
            ],
        ),
        compiler_params=pltpu.CompilerParams(
            dimension_semantics=("parallel", "parallel"),
            vmem_limit_bytes=vmem_limit,
        ),
    )(w, x)
    return res, mean


def series_decomp_ref(x, kernel_size):
    """Pure-JAX reference mirroring the PyTorch code."""
    pad = (kernel_size - 1) // 2
    front = jnp.repeat(x[:, 0:1, :], pad, axis=1)
    end = jnp.repeat(x[:, -1:, :], pad, axis=1)
    xp = jnp.concatenate([front, x, end], axis=1)
    L_out = xp.shape[1] - kernel_size + 1
    windows = jnp.stack(
        [xp[:, i:i + L_out, :] for i in range(kernel_size)], axis=0)
    mean = jnp.mean(windows, axis=0)
    res = x[:, :L_out, :] - mean
    return res, mean


if __name__ == "__main__":
    key = jax.random.PRNGKey(0)
    k1, k2 = jax.random.split(key)

    # Case 1: module-consistent tiny shapes (single-block path, full-C tile).
    B, L, C = 2, 16, 8
    kernel_size = 5  # odd kernel -> output length == L (standard usage)
    x = jax.random.normal(k1, (B, L, C), dtype=jnp.float32)

    res, mean = series_decomp(x, kernel_size)
    res = jax.block_until_ready(res)
    mean = jax.block_until_ready(mean)

    res_r, mean_r = series_decomp_ref(x, kernel_size)
    assert res.shape == (B, L, C) and mean.shape == (B, L, C)
    assert jnp.allclose(res, res_r, atol=1e-5, rtol=1e-5)
    assert jnp.allclose(mean, mean_r, atol=1e-5, rtol=1e-5)

    # Case 2: lane-dense channel tiles, batch-tiled grid, Autoformer-style K.
    B2, L2, C2, K2 = 4, 64, 512, 25
    x2 = jax.random.normal(k2, (B2, L2, C2), dtype=jnp.float32)
    res2, mean2 = series_decomp(x2, K2)
    res2 = jax.block_until_ready(res2)
    mean2 = jax.block_until_ready(mean2)
    res2_r, mean2_r = series_decomp_ref(x2, K2)
    assert jnp.allclose(res2, res2_r, atol=1e-4, rtol=1e-4)
    assert jnp.allclose(mean2, mean2_r, atol=1e-4, rtol=1e-4)

    print("KERNEL_OK")
</pallas_src>

<mosaic_0001>
module attributes {stable_mosaic.version = 11 : i64} {
  func.func @_decomp_kernel(%arg0: i32, %arg1: i32, %arg2: memref<16x16xf32, #tpu.memory_space<vmem>>, %arg3: memref<2x16x8xf32, #tpu.memory_space<vmem>>, %arg4: memref<2x16x8xf32, #tpu.memory_space<vmem>>, %arg5: memref<2x16x8xf32, #tpu.memory_space<vmem>>) attributes {dimension_semantics = [#tpu.dimension_semantics<parallel>, #tpu.dimension_semantics<parallel>], iteration_bounds = array<i64: 1, 1>, scalar_prefetch = 0 : i64, scratch_operands = 0 : i64, tpu.core_type = #tpu.core_type<tc>, window_params = [{pipeline_mode = #tpu.pipeline_mode<synchronous>, transform_indices = @transform_0, window_bounds = array<i64: 16, 16>}, {transform_indices = @transform_1, window_bounds = array<i64: 2, 16, 8>}, {transform_indices = @transform_2, window_bounds = array<i64: 2, 16, 8>}, {transform_indices = @transform_3, window_bounds = array<i64: 2, 16, 8>}]} {
    %c0 = arith.constant 0 : index
    %c0_0 = arith.constant 0 : index
    %0 = vector.load %arg2[%c0, %c0_0] : memref<16x16xf32, #tpu.memory_space<vmem>>, vector<16x16xf32>
    %c0_1 = arith.constant 0 : index
    %c0_2 = arith.constant 0 : index
    %c0_3 = arith.constant 0 : index
    %1 = vector.load %arg3[%c0_1, %c0_2, %c0_3] : memref<2x16x8xf32, #tpu.memory_space<vmem>>, vector<1x16x8xf32>
    %2 = vector.shape_cast %1 : vector<1x16x8xf32> to vector<16x8xf32>
    %cst = arith.constant dense<0.000000e+00> : vector<16x8xf32>
    %3 = tpu.matmul %0, %2, %cst {dimension_numbers = #tpu.dot_dimension_numbers<[1], [0], [0], [1], [0, 0, 1, 1], [], []>} : vector<16x16xf32>, vector<16x8xf32>, vector<16x8xf32> -> vector<16x8xf32>
    %cst_4 = arith.constant 2.000000e-01 : f32
    %4 = vector.broadcast %cst_4 : f32 to vector<16x8xf32>
    %5 = arith.mulf %3, %4 : vector<16x8xf32>
    %c0_5 = arith.constant 0 : index
    %c0_6 = arith.constant 0 : index
    %c0_7 = arith.constant 0 : index
    %6 = vector.load %arg5[%c0_5, %c0_6, %c0_7] : memref<2x16x8xf32, #tpu.memory_space<vmem>>, vector<1x16x8xf32>
    %7 = vector.shape_cast %6 : vector<1x16x8xf32> to vector<16x8xf32>
    %8 = vector.shape_cast %5 : vector<16x8xf32> to vector<1x16x8xf32>
    tpu.vector_store %arg5[%c0_5, %c0_6, %c0_7], %8 {strides = array<i32>} : memref<2x16x8xf32, #tpu.memory_space<vmem>>, vector<1x16x8xf32>,
    %9 = arith.subf %2, %5 : vector<16x8xf32>
    %c0_8 = arith.constant 0 : index
    %c0_9 = arith.constant 0 : index
    %c0_10 = arith.constant 0 : index
    %10 = vector.load %arg4[%c0_8, %c0_9, %c0_10] : memref<2x16x8xf32, #tpu.memory_space<vmem>>, vector<1x16x8xf32>
    %11 = vector.shape_cast %10 : vector<1x16x8xf32> to vector<16x8xf32>
    %12 = vector.shape_cast %9 : vector<16x8xf32> to vector<1x16x8xf32>
    tpu.vector_store %arg4[%c0_8, %c0_9, %c0_10], %12 {strides = array<i32>} : memref<2x16x8xf32, #tpu.memory_space<vmem>>, vector<1x16x8xf32>,
    %c1 = arith.constant 1 : index
    %c0_11 = arith.constant 0 : index
    %c0_12 = arith.constant 0 : index
    %13 = vector.load %arg3[%c1, %c0_11, %c0_12] : memref<2x16x8xf32, #tpu.memory_space<vmem>>, vector<1x16x8xf32>
    %14 = vector.shape_cast %13 : vector<1x16x8xf32> to vector<16x8xf32>
    %cst_13 = arith.constant dense<0.000000e+00> : vector<16x8xf32>
    %15 = tpu.matmul %0, %14, %cst_13 {dimension_numbers = #tpu.dot_dimension_numbers<[1], [0], [0], [1], [0, 0, 1, 1], [], []>} : vector<16x16xf32>, vector<16x8xf32>, vector<16x8xf32> -> vector<16x8xf32>
    %cst_14 = arith.constant 2.000000e-01 : f32
    %16 = vector.broadcast %cst_14 : f32 to vector<16x8xf32>
    %17 = arith.mulf %15, %16 : vector<16x8xf32>
    %c1_15 = arith.constant 1 : index
    %c0_16 = arith.constant 0 : index
    %c0_17 = arith.constant 0 : index
    %18 = vector.load %arg5[%c1_15, %c0_16, %c0_17] : memref<2x16x8xf32, #tpu.memory_space<vmem>>, vector<1x16x8xf32>
    %19 = vector.shape_cast %18 : vector<1x16x8xf32> to vector<16x8xf32>
    %20 = vector.shape_cast %17 : vector<16x8xf32> to vector<1x16x8xf32>
    tpu.vector_store %arg5[%c1_15, %c0_16, %c0_17], %20 {strides = array<i32>} : memref<2x16x8xf32, #tpu.memory_space<vmem>>, vector<1x16x8xf32>,
    %21 = arith.subf %14, %17 : vector<16x8xf32>
    %c1_18 = arith.constant 1 : index
    %c0_19 = arith.constant 0 : index
    %c0_20 = arith.constant 0 : index
    %22 = vector.load %arg4[%c1_18, %c0_19, %c0_20] : memref<2x16x8xf32, #tpu.memory_space<vmem>>, vector<1x16x8xf32>
    %23 = vector.shape_cast %22 : vector<1x16x8xf32> to vector<16x8xf32>
    %24 = vector.shape_cast %21 : vector<16x8xf32> to vector<1x16x8xf32>
    tpu.vector_store %arg4[%c1_18, %c0_19, %c0_20], %24 {strides = array<i32>} : memref<2x16x8xf32, #tpu.memory_space<vmem>>, vector<1x16x8xf32>,
    return
  }
  func.func @transform_0(%arg0: i32, %arg1: i32) -> (i32, i32) {
    %c0_i32 = arith.constant 0 : i32
    %c0_i32_0 = arith.constant 0 : i32
    %c0_i32_1 = arith.constant 0 : i32
    return %c0_i32, %c0_i32_0 : i32, i32
  }
  func.func @transform_1(%arg0: i32, %arg1: i32) -> (i32, i32, i32) {
    %c0_i32 = arith.constant 0 : i32
    %c0_i32_0 = arith.constant 0 : i32
    return %arg0, %c0_i32, %arg1 : i32, i32, i32
  }
  func.func @transform_2(%arg0: i32, %arg1: i32) -> (i32, i32, i32) {
    %c0_i32 = arith.constant 0 : i32
    %c0_i32_0 = arith.constant 0 : i32
    return %arg0, %c0_i32, %arg1 : i32, i32, i32
  }
  func.func @transform_3(%arg0: i32, %arg1: i32) -> (i32, i32, i32) {
    %c0_i32 = arith.constant 0 : i32
    %c0_i32_0 = arith.constant 0 : i32
    return %arg0, %c0_i32, %arg1 : i32, i32, i32
  }
}

</mosaic_0001>

<llo_original>
// kernel: tpu_custom_call.1
$region0: #{tpu_custom_call.1}
  #allocation0 [shape = 'u32[]', space=smem, size = 0x4, offset = 0x4, fixed_abs, tag = 'smem constant byte address 0x4 - core index']
  #allocation1 [shape = 'u32[72,128]{1,0:T(1,128)}', space=vmem, size = 0x9000, scoped, tag = 'internal scratch']
  %s0 = inlined_call_operand.vmem [shape: f32[16,16], index: 0, kind: input, shape index: {}]
  %s1 = inlined_call_operand.vmem [shape: f32[2,16,8], index: 1, kind: input, shape index: {}]
  %s2 = inlined_call_operand.vmem [shape: f32[2,16,8], index: 2, kind: output, shape index: {0}]
  %s3 = inlined_call_operand.vmem [shape: f32[2,16,8], index: 3, kind: output, shape index: {1}]
  %4 = xla_tuple %s2, %s3
  %s5 = sld [smem:[#allocation0]]
  $region26: #{tpu_custom_call.1} parent=0
    _
  %s7 = ssub.s32 1, %s5
  %s8 = scalar_select 0, %s7, %s5
  // Predicated region
  $region2: #{tpu_custom_call.1} parent=0 // pred_check
    _
  $region3: #{tpu_custom_call.1} parent=0 // pred_check_branch
    %10 = sbr.rel (0) target = $region5
  $region4: #{tpu_custom_call.1} parent=0 // pred_region
    _
  $region5: #{tpu_custom_call.1} parent=0 // pred_fallthru
    _
  // Predicated region
  $region6: #{tpu_custom_call.1} parent=0 // pred_check
    _
  $region7: #{tpu_custom_call.1} parent=0 // pred_check_branch
    %12 = sbr.rel (0) target = $region9
  $region8: #{tpu_custom_call.1} parent=0 // pred_region
    _
  $region9: #{tpu_custom_call.1} parent=0 // pred_fallthru
    _
  %v13 = vld [vmem:[%s0] sm:$0xff]
  %v14 = vld [vmem:[%s0 + $0x8] sm:$0xff]
  %v15 = vld [vmem:[%s1] sm:$0xff]
  %v16 = vld [vmem:[%s1 + $0x8] sm:$0xff]
  %vm17 = vcmask 130048
  %v19 = vsel %vm17, %v13, 0
  %v22 = vsel %vm17, %v14, 0
  %24 = vmatpush.msra.mxu0 0.0
  %25 = vmatpush.msra.mxu0 0.0
  %26 = vmatpush.msra.mxu0 0.0
  %27 = vmatpush.msra.mxu0 0.0
  %28 = vmatpush.msra.mxu0 0.0
  %29 = vmatpush.msra.mxu0 0.0
  %30 = vmatpush.msra.mxu0 0.0
  %31 = vmatpush.msra.mxu0 0.0
  %32 = vmatpush.msra.mxu0 0.0
  %33 = vmatpush.msra.mxu0 0.0
  %34 = vmatpush.msra.mxu0 0.0
  %35 = vmatpush.msra.mxu0 0.0
  %36 = vmatpush.msra.mxu0 0.0
  %37 = vmatpush.msra.mxu0 0.0
  %38 = vmatpush.msra.mxu0 %v16
  %39 = vmatpush.msra.mxu0 %v15
  %40 = vmatmul.f32.gmra.mxu0 %v19
  %v41 = vpop.f32.mrf.mxu0
  %v42 = vadd.f32 0.0, %v41
  %43 = vmatmul.f32.gmra.mxu0 %v22
  %v44 = vpop.f32.mrf.mxu0
  %v45 = vadd.f32 0.0, %v44
  %46 = vdwg.mxu0
  %v47 = vmul.f32 %v42, 0.2
  %v48 = vmul.f32 %v45, 0.2
  %vm49 = vcmask 64512
  %50 = vst.msk [vmem:[%s3] sm:$0xff] %vm49, %v47
  %51 = vst.msk [vmem:[%s3 + $0x8] sm:$0xff] %vm49, %v48
  %v52 = vsub.f32 %v15, %v47
  %v53 = vsub.f32 %v16, %v48
  %54 = vst.msk [vmem:[%s2] sm:$0xff] %vm49, %v52
  %55 = vst.msk [vmem:[%s2 + $0x8] sm:$0xff] %vm49, %v53
  %s56 = scalar_lea.vmem %s1, 16
  %v57 = vld [vmem:[%s56] sm:$0xff]
  %v58 = vld [vmem:[%s56 + $0x8] sm:$0xff]
  %59 = vmatpush.msra.mxu0 0.0
  %60 = vmatpush.msra.mxu0 0.0
  %61 = vmatpush.msra.mxu0 0.0
  %62 = vmatpush.msra.mxu0 0.0
  %63 = vmatpush.msra.mxu0 0.0
  %64 = vmatpush.msra.mxu0 0.0
  %65 = vmatpush.msra.mxu0 0.0
  %66 = vmatpush.msra.mxu0 0.0
  %67 = vmatpush.msra.mxu0 0.0
  %68 = vmatpush.msra.mxu0 0.0
  %69 = vmatpush.msra.mxu0 0.0
  %70 = vmatpush.msra.mxu0 0.0
  %71 = vmatpush.msra.mxu0 0.0
  %72 = vmatpush.msra.mxu0 0.0
  %73 = vmatpush.msra.mxu0 %v58
  %74 = vmatpush.msra.mxu0 %v57
  %75 = vmatmul.f32.gmra.mxu0 %v19
  %v76 = vpop.f32.mrf.mxu0
  %v77 = vadd.f32 0.0, %v76
  %78 = vmatmul.f32.gmra.mxu0 %v22
  %v79 = vpop.f32.mrf.mxu0
  %v80 = vadd.f32 0.0, %v79
  %81 = vdwg.mxu0
  %v82 = vmul.f32 %v77, 0.2
  %v83 = vmul.f32 %v80, 0.2
  %s84 = scalar_lea.vmem %s3, 16
  %85 = vst.msk [vmem:[%s84] sm:$0xff] %vm49, %v82
  %86 = vst.msk [vmem:[%s84 + $0x8] sm:$0xff] %vm49, %v83
  %v87 = vsub.f32 %v57, %v82
  %v88 = vsub.f32 %v58, %v83
  %s89 = scalar_lea.vmem %s2, 16
  %90 = vst.msk [vmem:[%s89] sm:$0xff] %vm49, %v87
  %91 = vst.msk [vmem:[%s89 + $0x8] sm:$0xff] %vm49, %v88
  // Predicated region
  $region10: #{tpu_custom_call.1} parent=0 // pred_check
    _
  $region11: #{tpu_custom_call.1} parent=0 // pred_check_branch
    %93 = sbr.rel (0) target = $region13
  $region12: #{tpu_custom_call.1} parent=0 // pred_region
    _
  $region13: #{tpu_custom_call.1} parent=0 // pred_fallthru
    _
  // Predicated region
  $region14: #{tpu_custom_call.1} parent=0 // pred_check
    _
  $region15: #{tpu_custom_call.1} parent=0 // pred_check_branch
    %95 = sbr.rel (0) target = $region17
  $region16: #{tpu_custom_call.1} parent=0 // pred_region
    _
  $region17: #{tpu_custom_call.1} parent=0 // pred_fallthru
    _
  // Predicated region
  $region18: #{tpu_custom_call.1} parent=0 // pred_check
    _
  $region19: #{tpu_custom_call.1} parent=0 // pred_check_branch
    %97 = sbr.rel (0) target = $region21
  $region20: #{tpu_custom_call.1} parent=0 // pred_region
    _
  $region21: #{tpu_custom_call.1} parent=0 // pred_fallthru
    _
  // Predicated region
  $region22: #{tpu_custom_call.1} parent=0 // pred_check
    _
  $region23: #{tpu_custom_call.1} parent=0 // pred_check_branch
    %99 = sbr.rel (0) target = $region25
  $region24: #{tpu_custom_call.1} parent=0 // pred_region
    _
  $region25: #{tpu_custom_call.1} parent=0 // pred_fallthru
    _

</llo_original>
